<compile_context>
chip_gen: v7x
topology: tpu7x:2x2x1
jax: 0.10.0
libtpu: 0.0.40
codegen_flags: <defaults>
</compile_context>

<pallas_src>
import jax
import jax.numpy as jnp
from jax.experimental import pallas as pl
from jax.experimental.pallas import tpu as pltpu

LANE = 128
SUBLANE = 8


def _round_up(x, m):
    return (x + m - 1) // m * m


def critic_kernel(s_ref, a_ref, w1s_ref, w1a_ref, b1_ref, w2_ref, b2_ref,
                  w3_ref, b3_ref, o_ref):
    # Layer 1: concat folded into two MXU matmuls.
    h1 = (jnp.dot(s_ref[...], w1s_ref[...], preferred_element_type=jnp.float32)
          + jnp.dot(a_ref[...], w1a_ref[...], preferred_element_type=jnp.float32)
          + b1_ref[...])
    h1 = jnp.maximum(h1, 0.0)
    # Layer 2.
    h2 = jnp.dot(h1, w2_ref[...], preferred_element_type=jnp.float32) + b2_ref[...]
    h2 = jnp.maximum(h2, 0.0)
    # Output layer: lane-dense 128-wide padded output (real Q value is column 0).
    o_ref[...] = (jnp.dot(h2, w3_ref[...], preferred_element_type=jnp.float32)
                  + b3_ref[...]).astype(o_ref.dtype)


def critic_forward(state, action, params, *, tile_b=512):
    """state: (B, state_dim), action: (B, action_dim) -> (B, 1)."""
    w1, b1, w2, b2, w3, b3 = params
    B, S = state.shape
    A = action.shape[1]
    H = w1.shape[1]
    assert w1.shape[0] == S + A

    Hp = max(LANE, _round_up(H, LANE))   # padded hidden width (lane-dense)
    Op = LANE                            # padded output width (lane-dense store)

    f32 = jnp.float32
    # Zero-pad weights / biases to 128-lane boundaries (numerically exact).
    w1p = jnp.zeros((S + A, Hp), f32).at[:, :H].set(w1.astype(f32))
    w1s, w1a = w1p[:S], w1p[S:]
    b1p = jnp.zeros((1, Hp), f32).at[:, :H].set(b1.reshape(1, H).astype(f32))
    w2p = jnp.zeros((Hp, Hp), f32).at[:H, :H].set(w2.astype(f32))
    b2p = jnp.zeros((1, Hp), f32).at[:, :H].set(b2.reshape(1, H).astype(f32))
    w3p = jnp.zeros((Hp, Op), f32).at[:H, :1].set(w3.reshape(H, 1).astype(f32))
    b3p = jnp.zeros((1, Op), f32).at[:, :1].set(b3.reshape(1, 1).astype(f32))

    # Batch tiling: sublane-aligned tile, pad B so the grid divides evenly.
    tb = _round_up(min(tile_b, _round_up(B, SUBLANE)), SUBLANE)
    Bp = _round_up(B, tb)
    if Bp != B:
        state = jnp.zeros((Bp, S), state.dtype).at[:B].set(state)
        action = jnp.zeros((Bp, A), action.dtype).at[:B].set(action)
    grid = (Bp // tb,)

    flops = 2 * B * ((S + A) * H + H * H + H * 1)
    bytes_accessed = 4 * (B * (S + A)                 # inputs
                          + (S + A) * Hp + Hp * Hp + Hp * Op  # weights
                          + B * Op)                   # padded output
    cost = pl.CostEstimate(flops=flops, transcendentals=0,
                           bytes_accessed=bytes_accessed)

    out_padded = pl.pallas_call(
        critic_kernel,
        out_shape=jax.ShapeDtypeStruct((Bp, Op), jnp.float32),
        grid_spec=pltpu.PrefetchScalarGridSpec(
            num_scalar_prefetch=0,
            grid=grid,
            in_specs=[
                pl.BlockSpec((tb, S), lambda i: (i, 0)),   # state tile
                pl.BlockSpec((tb, A), lambda i: (i, 0)),   # action tile
                pl.BlockSpec((S, Hp), lambda i: (0, 0)),   # W1[:S]   (resident)
                pl.BlockSpec((A, Hp), lambda i: (0, 0)),   # W1[S:]   (resident)
                pl.BlockSpec((1, Hp), lambda i: (0, 0)),   # b1       (resident)
                pl.BlockSpec((Hp, Hp), lambda i: (0, 0)),  # W2       (resident)
                pl.BlockSpec((1, Hp), lambda i: (0, 0)),   # b2       (resident)
                pl.BlockSpec((Hp, Op), lambda i: (0, 0)),  # W3 (padded, resident)
                pl.BlockSpec((1, Op), lambda i: (0, 0)),   # b3 (padded, resident)
            ],
            out_specs=pl.BlockSpec((tb, Op), lambda i: (i, 0)),
        ),
        compiler_params=pltpu.CompilerParams(
            dimension_semantics=("parallel",),
            vmem_limit_bytes=32 * 1024 * 1024,
        ),
        cost_estimate=cost,
    )(state, action, w1s, w1a, b1p, w2p, b2p, w3p, b3p)

    return out_padded[:B, :1]


def init_critic_params(key, state_dim, hidden_dim, action_dim):
    """PyTorch-Linear-style init (uniform +/- 1/sqrt(fan_in)).
    Weights stored as [in, out] (transposed vs. torch's [out, in])."""
    in_dim = state_dim + action_dim
    ks = jax.random.split(key, 6)

    def lin(kw, kb, fan_in, fan_out):
        bound = 1.0 / jnp.sqrt(jnp.float32(fan_in))
        w = jax.random.uniform(kw, (fan_in, fan_out), jnp.float32, -bound, bound)
        b = jax.random.uniform(kb, (fan_out,), jnp.float32, -bound, bound)
        return w, b

    w1, b1 = lin(ks[0], ks[1], in_dim, hidden_dim)
    w2, b2 = lin(ks[2], ks[3], hidden_dim, hidden_dim)
    w3, b3 = lin(ks[4], ks[5], hidden_dim, 1)
    return (w1, b1, w2, b2, w3, b3)


def critic_reference(state, action, params):
    w1, b1, w2, b2, w3, b3 = params
    x = jnp.concatenate([state, action], axis=1)
    x = jnp.maximum(x @ w1 + b1, 0.0)
    x = jnp.maximum(x @ w2 + b2, 0.0)
    return x @ w3 + b3.reshape(1, 1)


if __name__ == "__main__":
    state_dim, action_dim, hidden_dim, batch = 12, 4, 32, 8

    key = jax.random.PRNGKey(0)
    k_state, k_action, k_params = jax.random.split(key, 3)
    state = jax.random.normal(k_state, (batch, state_dim), jnp.float32)
    action = jax.random.normal(k_action, (batch, action_dim), jnp.float32)
    params = init_critic_params(k_params, state_dim, hidden_dim, action_dim)

    out = critic_forward(state, action, params)
    out = jax.block_until_ready(out)

    ref = critic_reference(state, action, params)
    assert out.shape == (batch, 1)
    assert jnp.allclose(out, ref, atol=1e-5, rtol=1e-5), "mismatch vs reference"

    print("KERNEL_OK")
</pallas_src>

<mosaic_0001>
module attributes {stable_mosaic.version = 11 : i64} {
  func.func @critic_kernel(%arg0: i32, %arg1: memref<8x12xf32, #tpu.memory_space<vmem>>, %arg2: memref<8x4xf32, #tpu.memory_space<vmem>>, %arg3: memref<12x128xf32, #tpu.memory_space<vmem>>, %arg4: memref<4x128xf32, #tpu.memory_space<vmem>>, %arg5: memref<1x128xf32, #tpu.memory_space<vmem>>, %arg6: memref<128x128xf32, #tpu.memory_space<vmem>>, %arg7: memref<1x128xf32, #tpu.memory_space<vmem>>, %arg8: memref<128x128xf32, #tpu.memory_space<vmem>>, %arg9: memref<1x128xf32, #tpu.memory_space<vmem>>, %arg10: memref<8x128xf32, #tpu.memory_space<vmem>>) attributes {dimension_semantics = [#tpu.dimension_semantics<parallel>], iteration_bounds = array<i64: 1>, scalar_prefetch = 0 : i64, scratch_operands = 0 : i64, tpu.core_type = #tpu.core_type<tc>, window_params = [{transform_indices = @transform_0, window_bounds = array<i64: 8, 12>}, {transform_indices = @transform_1, window_bounds = array<i64: 8, 4>}, {pipeline_mode = #tpu.pipeline_mode<synchronous>, transform_indices = @transform_2, window_bounds = array<i64: 12, 128>}, {pipeline_mode = #tpu.pipeline_mode<synchronous>, transform_indices = @transform_3, window_bounds = array<i64: 4, 128>}, {pipeline_mode = #tpu.pipeline_mode<synchronous>, transform_indices = @transform_4, window_bounds = array<i64: 1, 128>}, {pipeline_mode = #tpu.pipeline_mode<synchronous>, transform_indices = @transform_5, window_bounds = array<i64: 128, 128>}, {pipeline_mode = #tpu.pipeline_mode<synchronous>, transform_indices = @transform_6, window_bounds = array<i64: 1, 128>}, {pipeline_mode = #tpu.pipeline_mode<synchronous>, transform_indices = @transform_7, window_bounds = array<i64: 128, 128>}, {pipeline_mode = #tpu.pipeline_mode<synchronous>, transform_indices = @transform_8, window_bounds = array<i64: 1, 128>}, {transform_indices = @transform_9, window_bounds = array<i64: 8, 128>}]} {
    %c0 = arith.constant 0 : index
    %c0_0 = arith.constant 0 : index
    %0 = vector.load %arg1[%c0, %c0_0] : memref<8x12xf32, #tpu.memory_space<vmem>>, vector<8x12xf32>
    %c0_1 = arith.constant 0 : index
    %c0_2 = arith.constant 0 : index
    %1 = vector.load %arg3[%c0_1, %c0_2] : memref<12x128xf32, #tpu.memory_space<vmem>>, vector<12x128xf32>
    %cst = arith.constant dense<0.000000e+00> : vector<8x128xf32>
    %2 = tpu.matmul %0, %1, %cst {dimension_numbers = #tpu.dot_dimension_numbers<[1], [0], [0], [1], [0, 0, 1, 1], [], []>} : vector<8x12xf32>, vector<12x128xf32>, vector<8x128xf32> -> vector<8x128xf32>
    %c0_3 = arith.constant 0 : index
    %c0_4 = arith.constant 0 : index
    %3 = vector.load %arg2[%c0_3, %c0_4] : memref<8x4xf32, #tpu.memory_space<vmem>>, vector<8x4xf32>
    %c0_5 = arith.constant 0 : index
    %c0_6 = arith.constant 0 : index
    %4 = vector.load %arg4[%c0_5, %c0_6] : memref<4x128xf32, #tpu.memory_space<vmem>>, vector<4x128xf32>
    %cst_7 = arith.constant dense<0.000000e+00> : vector<8x128xf32>
    %5 = tpu.matmul %3, %4, %cst_7 {dimension_numbers = #tpu.dot_dimension_numbers<[1], [0], [0], [1], [0, 0, 1, 1], [], []>} : vector<8x4xf32>, vector<4x128xf32>, vector<8x128xf32> -> vector<8x128xf32>
    %6 = arith.addf %2, %5 : vector<8x128xf32>
    %c0_8 = arith.constant 0 : index
    %c0_9 = arith.constant 0 : index
    %7 = vector.load %arg5[%c0_8, %c0_9] : memref<1x128xf32, #tpu.memory_space<vmem>>, vector<1x128xf32>
    %8 = vector.broadcast %7 : vector<1x128xf32> to vector<8x128xf32>
    %9 = arith.addf %6, %8 : vector<8x128xf32>
    %cst_10 = arith.constant 0.000000e+00 : f32
    %10 = vector.broadcast %cst_10 : f32 to vector<8x128xf32>
    %11 = arith.maximumf %9, %10 : vector<8x128xf32>
    %c0_11 = arith.constant 0 : index
    %c0_12 = arith.constant 0 : index
    %12 = vector.load %arg6[%c0_11, %c0_12] : memref<128x128xf32, #tpu.memory_space<vmem>>, vector<128x128xf32>
    %cst_13 = arith.constant dense<0.000000e+00> : vector<8x128xf32>
    %13 = tpu.matmul %11, %12, %cst_13 {dimension_numbers = #tpu.dot_dimension_numbers<[1], [0], [0], [1], [0, 0, 1, 1], [], []>} : vector<8x128xf32>, vector<128x128xf32>, vector<8x128xf32> -> vector<8x128xf32>
    %c0_14 = arith.constant 0 : index
    %c0_15 = arith.constant 0 : index
    %14 = vector.load %arg7[%c0_14, %c0_15] : memref<1x128xf32, #tpu.memory_space<vmem>>, vector<1x128xf32>
    %15 = vector.broadcast %14 : vector<1x128xf32> to vector<8x128xf32>
    %16 = arith.addf %13, %15 : vector<8x128xf32>
    %cst_16 = arith.constant 0.000000e+00 : f32
    %17 = vector.broadcast %cst_16 : f32 to vector<8x128xf32>
    %18 = arith.maximumf %16, %17 : vector<8x128xf32>
    %c0_17 = arith.constant 0 : index
    %c0_18 = arith.constant 0 : index
    %19 = vector.load %arg8[%c0_17, %c0_18] : memref<128x128xf32, #tpu.memory_space<vmem>>, vector<128x128xf32>
    %cst_19 = arith.constant dense<0.000000e+00> : vector<8x128xf32>
    %20 = tpu.matmul %18, %19, %cst_19 {dimension_numbers = #tpu.dot_dimension_numbers<[1], [0], [0], [1], [0, 0, 1, 1], [], []>} : vector<8x128xf32>, vector<128x128xf32>, vector<8x128xf32> -> vector<8x128xf32>
    %c0_20 = arith.constant 0 : index
    %c0_21 = arith.constant 0 : index
    %21 = vector.load %arg9[%c0_20, %c0_21] : memref<1x128xf32, #tpu.memory_space<vmem>>, vector<1x128xf32>
    %22 = vector.broadcast %21 : vector<1x128xf32> to vector<8x128xf32>
    %23 = arith.addf %20, %22 : vector<8x128xf32>
    %c0_22 = arith.constant 0 : index
    %c0_23 = arith.constant 0 : index
    %24 = vector.load %arg10[%c0_22, %c0_23] : memref<8x128xf32, #tpu.memory_space<vmem>>, vector<8x128xf32>
    tpu.vector_store %arg10[%c0_22, %c0_23], %23 {strides = array<i32>} : memref<8x128xf32, #tpu.memory_space<vmem>>, vector<8x128xf32>,
    return
  }
  func.func @transform_0(%arg0: i32) -> (i32, i32) {
    %c0_i32 = arith.constant 0 : i32
    %c0_i32_0 = arith.constant 0 : i32
    return %arg0, %c0_i32 : i32, i32
  }
  func.func @transform_1(%arg0: i32) -> (i32, i32) {
    %c0_i32 = arith.constant 0 : i32
    %c0_i32_0 = arith.constant 0 : i32
    return %arg0, %c0_i32 : i32, i32
  }
  func.func @transform_2(%arg0: i32) -> (i32, i32) {
    %c0_i32 = arith.constant 0 : i32
    %c0_i32_0 = arith.constant 0 : i32
    %c0_i32_1 = arith.constant 0 : i32
    return %c0_i32, %c0_i32_0 : i32, i32
  }
  func.func @transform_3(%arg0: i32) -> (i32, i32) {
    %c0_i32 = arith.constant 0 : i32
    %c0_i32_0 = arith.constant 0 : i32
    %c0_i32_1 = arith.constant 0 : i32
    return %c0_i32, %c0_i32_0 : i32, i32
  }
  func.func @transform_4(%arg0: i32) -> (i32, i32) {
    %c0_i32 = arith.constant 0 : i32
    %c0_i32_0 = arith.constant 0 : i32
    %c0_i32_1 = arith.constant 0 : i32
    return %c0_i32, %c0_i32_0 : i32, i32
  }
  func.func @transform_5(%arg0: i32) -> (i32, i32) {
    %c0_i32 = arith.constant 0 : i32
    %c0_i32_0 = arith.constant 0 : i32
    %c0_i32_1 = arith.constant 0 : i32
    return %c0_i32, %c0_i32_0 : i32, i32
  }
  func.func @transform_6(%arg0: i32) -> (i32, i32) {
    %c0_i32 = arith.constant 0 : i32
    %c0_i32_0 = arith.constant 0 : i32
    %c0_i32_1 = arith.constant 0 : i32
    return %c0_i32, %c0_i32_0 : i32, i32
  }
  func.func @transform_7(%arg0: i32) -> (i32, i32) {
    %c0_i32 = arith.constant 0 : i32
    %c0_i32_0 = arith.constant 0 : i32
    %c0_i32_1 = arith.constant 0 : i32
    return %c0_i32, %c0_i32_0 : i32, i32
  }
  func.func @transform_8(%arg0: i32) -> (i32, i32) {
    %c0_i32 = arith.constant 0 : i32
    %c0_i32_0 = arith.constant 0 : i32
    %c0_i32_1 = arith.constant 0 : i32
    return %c0_i32, %c0_i32_0 : i32, i32
  }
  func.func @transform_9(%arg0: i32) -> (i32, i32) {
    %c0_i32 = arith.constant 0 : i32
    %c0_i32_0 = arith.constant 0 : i32
    return %arg0, %c0_i32 : i32, i32
  }
}

</mosaic_0001>

<llo_original>
// kernel: tpu_custom_call.1
$region0: #{tpu_custom_call.1}
  #allocation0 [shape = 'u32[]', space=smem, size = 0x4, offset = 0x4, fixed_abs, tag = 'smem constant byte address 0x4 - core index']
  #allocation1 [shape = 'u32[144,128]{1,0:T(1,128)}', space=vmem, size = 0x12000, scoped, tag = 'internal scratch']
  %s0 = inlined_call_operand.hbm [shape: f32[8,12], index: 0, kind: input, shape index: {}]
  %s1 = inlined_call_operand.vmem [shape: f32[8,4], index: 1, kind: input, shape index: {}]
  %s2 = inlined_call_operand.vmem [shape: f32[12,128], index: 2, kind: input, shape index: {}]
  %s3 = inlined_call_operand.vmem [shape: f32[4,128], index: 3, kind: input, shape index: {}]
  %s4 = inlined_call_operand.vmem [shape: f32[1,128], index: 4, kind: input, shape index: {}]
  %s5 = inlined_call_operand.hbm [shape: f32[128,128], index: 5, kind: input, shape index: {}]
  %s6 = inlined_call_operand.vmem [shape: f32[1,128], index: 6, kind: input, shape index: {}]
  %s7 = inlined_call_operand.hbm [shape: f32[128,128], index: 7, kind: input, shape index: {}]
  %s8 = inlined_call_operand.vmem [shape: f32[1,128], index: 8, kind: input, shape index: {}]
  %s9 = inlined_call_operand.hbm [shape: f32[8,128], index: 9, kind: output, shape index: {}]
  %s10 = sld [smem:[#allocation0]]
  $region58: #{tpu_custom_call.1} parent=0
    _
  %s12 = ssub.s32 1, %s10
  %s13 = scalar_select 0, %s12, %s10
  $region1: #{tpu_custom_call.1} parent=0
    #allocation2 [shape = 'u8[4096]{0}', space=vmem, size = 0x1000, scoped, tag = 'input window, operand 0, single buffered']
    #allocation3 [shape = 's32[1]{0}', space=sflag, size = 0x4, scoped, tag = 'scoped memory for tpu_custom_call.1']
    #allocation4 [shape = 's32[1]{0}', space=sflag, size = 0x4, scoped, tag = 'scoped memory for tpu_custom_call.1']
    #allocation5 [shape = 'u8[65536]{0}', space=vmem, size = 0x10000, scoped, tag = 'input window, operand 5, single buffered']
    #allocation6 [shape = 's32[1]{0}', space=sflag, size = 0x4, scoped, tag = 'scoped memory for tpu_custom_call.1']
    #allocation7 [shape = 'u8[65536]{0}', space=vmem, size = 0x10000, scoped, tag = 'input window, operand 7, single buffered']
    #allocation8 [shape = 'u8[4096]{0}', space=vmem, size = 0x1000, scoped, tag = 'output window, operand 0, single buffered']
    %14 = vsyncpa [#allocation3], 0
    %15 = vsyncpa [#allocation6], 0
    %16 = vsyncpa [#allocation4], 0
    // Predicated region
    $region2: #{tpu_custom_call.1} parent=1 // pred_check
      _
    $region3: #{tpu_custom_call.1} parent=1 // pred_check_branch
      %18 = sbr.rel (0) target = $region5
    $region4: #{tpu_custom_call.1} parent=1 // pred_region
      %s20 = ssub.s32 128, 128
      %21 = vsyncadd [#allocation3], %s20
      %s23 = sshll.u32 [#allocation2], 4
      %s24 = int_to_ptr.vmem [resolvable:$true] %s23
      %26 = dma.hbm_to_vmem [thread:$0]  %s0, 128, %s24, [#allocation3]
    $region5: #{tpu_custom_call.1} parent=1 // pred_fallthru
      _
    // Predicated region
    $region6: #{tpu_custom_call.1} parent=1 // pred_check
      _
    $region7: #{tpu_custom_call.1} parent=1 // pred_check_branch
      %28 = sbr.rel (0) target = $region9
    $region8: #{tpu_custom_call.1} parent=1 // pred_region
      _
    $region9: #{tpu_custom_call.1} parent=1 // pred_fallthru
      _
    // Predicated region
    $region10: #{tpu_custom_call.1} parent=1 // pred_check
      _
    $region11: #{tpu_custom_call.1} parent=1 // pred_check_branch
      %30 = sbr.rel (0) target = $region13
    $region12: #{tpu_custom_call.1} parent=1 // pred_region
      _
    $region13: #{tpu_custom_call.1} parent=1 // pred_fallthru
      _
    // Predicated region
    $region14: #{tpu_custom_call.1} parent=1 // pred_check
      _
    $region15: #{tpu_custom_call.1} parent=1 // pred_check_branch
      %32 = sbr.rel (0) target = $region17
    $region16: #{tpu_custom_call.1} parent=1 // pred_region
      _
    $region17: #{tpu_custom_call.1} parent=1 // pred_fallthru
      _
    // Predicated region
    $region18: #{tpu_custom_call.1} parent=1 // pred_check
      _
    $region19: #{tpu_custom_call.1} parent=1 // pred_check_branch
      %34 = sbr.rel (0) target = $region21
    $region20: #{tpu_custom_call.1} parent=1 // pred_region
      _
    $region21: #{tpu_custom_call.1} parent=1 // pred_fallthru
      _
    // Predicated region
    $region22: #{tpu_custom_call.1} parent=1 // pred_check
      _
    $region23: #{tpu_custom_call.1} parent=1 // pred_check_branch
      %36 = sbr.rel (0) target = $region25
    $region24: #{tpu_custom_call.1} parent=1 // pred_region
      %s38 = ssub.s32 2048, 2048
      %39 = vsyncadd [#allocation6], %s38
      %s40 = sshll.u32 [#allocation5], 4
      %s41 = int_to_ptr.vmem [resolvable:$true] %s40
      %46 = dma.hbm_to_vmem [thread:$0]  %s5, 2048, %s41, [#allocation6], 128, 128, 8
    $region25: #{tpu_custom_call.1} parent=1 // pred_fallthru
      _
    // Predicated region
    $region26: #{tpu_custom_call.1} parent=1 // pred_check
      _
    $region27: #{tpu_custom_call.1} parent=1 // pred_check_branch
      %48 = sbr.rel (0) target = $region29
    $region28: #{tpu_custom_call.1} parent=1 // pred_region
      _
    $region29: #{tpu_custom_call.1} parent=1 // pred_fallthru
      _
    // Predicated region
    $region30: #{tpu_custom_call.1} parent=1 // pred_check
      _
    $region31: #{tpu_custom_call.1} parent=1 // pred_check_branch
      %50 = sbr.rel (0) target = $region33
    $region32: #{tpu_custom_call.1} parent=1 // pred_region
      %s52 = ssub.s32 2048, 2048
      %53 = vsyncadd [#allocation6], %s52
      %s54 = sshll.u32 [#allocation7], 4
      %s55 = int_to_ptr.vmem [resolvable:$true] %s54
      %60 = dma.hbm_to_vmem [thread:$0]  %s7, 2048, %s55, [#allocation6], 128, 128, 8
    $region33: #{tpu_custom_call.1} parent=1 // pred_fallthru
      _
    // Predicated region
    $region34: #{tpu_custom_call.1} parent=1 // pred_check
      _
    $region35: #{tpu_custom_call.1} parent=1 // pred_check_branch
      %62 = sbr.rel (0) target = $region37
    $region36: #{tpu_custom_call.1} parent=1 // pred_region
      _
    $region37: #{tpu_custom_call.1} parent=1 // pred_fallthru
      _
    // Predicated region
    $region38: #{tpu_custom_call.1} parent=1 // pred_check
      _
    $region39: #{tpu_custom_call.1} parent=1 // pred_check_branch
      %64 = sbr.rel (0) target = $region41
    $region40: #{tpu_custom_call.1} parent=1 // pred_region
      %65 = dma.done [#allocation3], 128
    $region41: #{tpu_custom_call.1} parent=1 // pred_fallthru
      _
    // Predicated region
    $region42: #{tpu_custom_call.1} parent=1 // pred_check
      _
    $region43: #{tpu_custom_call.1} parent=1 // pred_check_branch
      %67 = sbr.rel (0) target = $region45
    $region44: #{tpu_custom_call.1} parent=1 // pred_region
      %68 = dma.done [#allocation6], 2048
    $region45: #{tpu_custom_call.1} parent=1 // pred_fallthru
      _
    // Predicated region
    $region46: #{tpu_custom_call.1} parent=1 // pred_check
      _
    $region47: #{tpu_custom_call.1} parent=1 // pred_check_branch
      %70 = sbr.rel (0) target = $region49
    $region48: #{tpu_custom_call.1} parent=1 // pred_region
      %71 = dma.done [#allocation6], 2048
    $region49: #{tpu_custom_call.1} parent=1 // pred_fallthru
      _
    %v72 = vld [vmem:[#allocation2] sm:$0xff]
    %v73 = vld [vmem:[%s2] sm:$0xff]
    %v74 = vld [vmem:[%s2 + $0x8] sm:$0xf]
    %v75 = vld [vmem:[%s1] sm:$0xff]
    %v76 = vld [vmem:[%s3] sm:$0xf]
    %vm77 = vcmask 31744
    %v79 = vsel %vm77, %v75, 0
    %vm81 = vcmask 1043456
    %v83 = vsel %vm81, %v76, 0
    %85 = vmatprep.subr.mxu0 0.0
    %86 = vmatpush1.msra.mxu0 %v83
    %87 = vmatprep.subr.mxu0 0.0
    %88 = vmatpush1.msra.mxu0 0.0
    %89 = vmatprep.subr.mxu0 0.0
    %90 = vmatpush1.msra.mxu0 0.0
    %91 = vmatprep.subr.mxu0 0.0
    %92 = vmatpush1.msra.mxu0 0.0
    %93 = vmatprep.subr.mxu0 0.0
    %94 = vmatpush1.msra.mxu0 0.0
    %95 = vmatprep.subr.mxu0 0.0
    %96 = vmatpush1.msra.mxu0 0.0
    %97 = vmatprep.subr.mxu0 0.0
    %98 = vmatpush1.msra.mxu0 0.0
    %99 = vmatprep.subr.mxu0 0.0
    %100 = vmatpush1.msra.mxu0 0.0
    %101 = vmatprep.subr.mxu0 0.0
    %102 = vmatpush1.msra.mxu0 0.0
    %103 = vmatprep.subr.mxu0 0.0
    %104 = vmatpush1.msra.mxu0 0.0
    %105 = vmatprep.subr.mxu0 0.0
    %106 = vmatpush1.msra.mxu0 0.0
    %107 = vmatprep.subr.mxu0 0.0
    %108 = vmatpush1.msra.mxu0 0.0
    %109 = vmatprep.subr.mxu0 0.0
    %110 = vmatpush1.msra.mxu0 0.0
    %111 = vmatprep.subr.mxu0 0.0
    %112 = vmatpush1.msra.mxu0 0.0
    %113 = vmatprep.subr.mxu0 0.0
    %114 = vmatpush1.msra.mxu0 0.0
    %115 = vmatprep.subr.mxu0 0.0
    %116 = vmatpush1.msra.mxu0 0.0
    %117 = vmatprep.subr.mxu0 0.0
    %118 = vmatpush1.msra.mxu0 0.0
    %119 = vmatprep.subr.mxu0 0.0
    %120 = vmatpush1.msra.mxu0 0.0
    %121 = vmatprep.subr.mxu0 0.0
    %122 = vmatpush1.msra.mxu0 0.0
    %123 = vmatprep.subr.mxu0 0.0
    %124 = vmatpush1.msra.mxu0 0.0
    %125 = vmatprep.subr.mxu0 0.0
    %126 = vmatpush1.msra.mxu0 0.0
    %127 = vmatprep.subr.mxu0 0.0
    %128 = vmatpush1.msra.mxu0 0.0
    %129 = vmatprep.subr.mxu0 0.0
    %130 = vmatpush1.msra.mxu0 0.0
    %131 = vmatprep.subr.mxu0 0.0
    %132 = vmatpush1.msra.mxu0 0.0
    %133 = vmatprep.subr.mxu0 0.0
    %134 = vmatpush1.msra.mxu0 0.0
    %135 = vmatprep.subr.mxu0 0.0
    %136 = vmatpush1.msra.mxu0 0.0
    %137 = vmatprep.subr.mxu0 0.0
    %138 = vmatpush1.msra.mxu0 0.0
    %139 = vmatprep.subr.mxu0 0.0
    %140 = vmatpush1.msra.mxu0 0.0
    %141 = vmatprep.subr.mxu0 0.0
    %142 = vmatpush1.msra.mxu0 0.0
    %143 = vmatprep.subr.mxu0 0.0
    %144 = vmatpush1.msra.mxu0 0.0
    %145 = vmatprep.subr.mxu0 0.0
    %146 = vmatpush1.msra.mxu0 0.0
    %147 = vmatprep.subr.mxu0 0.0
    %148 = vmatpush1.msra.mxu0 0.0
    %149 = vmatprep.mubr.f32.mxu0 0.0
    %150 = vmatmul.mubr.f32.gmra.mrb[0].mxu0 %v79
    %v151 = vpop.f32.mrb[0].mxu0
    %v152 = vadd.f32 0.0, %v151
    %v153 = vpop.f32.mrb[0].mxu0
    %154 = vdwg.mxu0
    %vm155 = vcmask 97280
    %v157 = vsel %vm155, %v72, 0
    %v160 = vsel %vm81, %v74, 0
    %162 = vmatprep.subr.mxu0 0.0
    %163 = vmatpush1.msra.mxu0 %v73
    %164 = vmatprep.subr.mxu0 0.0
    %165 = vmatpush1.msra.mxu0 %v160
    %166 = vmatprep.subr.mxu0 0.0
    %167 = vmatpush1.msra.mxu0 0.0
    %168 = vmatprep.subr.mxu0 0.0
    %169 = vmatpush1.msra.mxu0 0.0
    %170 = vmatprep.subr.mxu0 0.0
    %171 = vmatpush1.msra.mxu0 0.0
    %172 = vmatprep.subr.mxu0 0.0
    %173 = vmatpush1.msra.mxu0 0.0
    %174 = vmatprep.subr.mxu0 0.0
    %175 = vmatpush1.msra.mxu0 0.0
    %176 = vmatprep.subr.mxu0 0.0
    %177 = vmatpush1.msra.mxu0 0.0
    %178 = vmatprep.subr.mxu0 0.0
    %179 = vmatpush1.msra.mxu0 0.0
    %180 = vmatprep.subr.mxu0 0.0
    %181 = vmatpush1.msra.mxu0 0.0
    %182 = vmatprep.subr.mxu0 0.0
    %183 = vmatpush1.msra.mxu0 0.0
    %184 = vmatprep.subr.mxu0 0.0
    %185 = vmatpush1.msra.mxu0 0.0
    %186 = vmatprep.subr.mxu0 0.0
    %187 = vmatpush1.msra.mxu0 0.0
    %188 = vmatprep.subr.mxu0 0.0
    %189 = vmatpush1.msra.mxu0 0.0
    %190 = vmatprep.subr.mxu0 0.0
    %191 = vmatpush1.msra.mxu0 0.0
    %192 = vmatprep.subr.mxu0 0.0
    %193 = vmatpush1.msra.mxu0 0.0
    %194 = vmatprep.subr.mxu0 0.0
    %195 = vmatpush1.msra.mxu0 0.0
    %196 = vmatprep.subr.mxu0 0.0
    %197 = vmatpush1.msra.mxu0 0.0
    %198 = vmatprep.subr.mxu0 0.0
    %199 = vmatpush1.msra.mxu0 0.0
    %200 = vmatprep.subr.mxu0 0.0
    %201 = vmatpush1.msra.mxu0 0.0
    %202 = vmatprep.subr.mxu0 0.0
    %203 = vmatpush1.msra.mxu0 0.0
    %204 = vmatprep.subr.mxu0 0.0
    %205 = vmatpush1.msra.mxu0 0.0
    %206 = vmatprep.subr.mxu0 0.0
    %207 = vmatpush1.msra.mxu0 0.0
    %208 = vmatprep.subr.mxu0 0.0
    %209 = vmatpush1.msra.mxu0 0.0
    %210 = vmatprep.subr.mxu0 0.0
    %211 = vmatpush1.msra.mxu0 0.0
    %212 = vmatprep.subr.mxu0 0.0
    %213 = vmatpush1.msra.mxu0 0.0
    %214 = vmatprep.subr.mxu0 0.0
    %215 = vmatpush1.msra.mxu0 0.0
    %216 = vmatprep.subr.mxu0 0.0
    %217 = vmatpush1.msra.mxu0 0.0
    %218 = vmatprep.subr.mxu0 0.0
    %219 = vmatpush1.msra.mxu0 0.0
    %220 = vmatprep.subr.mxu0 0.0
    %221 = vmatpush1.msra.mxu0 0.0
    %222 = vmatprep.subr.mxu0 0.0
    %223 = vmatpush1.msra.mxu0 0.0
    %224 = vmatprep.subr.mxu0 0.0
    %225 = vmatpush1.msra.mxu0 0.0
    %226 = vmatprep.mubr.f32.mxu0 0.0
    %227 = vmatmul.mubr.f32.gmra.mrb[0].mxu0 %v157
    %v228 = vpop.f32.mrb[0].mxu0
    %v229 = vadd.f32 %v152, %v228
    %v230 = vpop.f32.mrb[0].mxu0
    %231 = vdwg.mxu0
    %v232 = vld [vmem:[%s4] sm:$0x1]
    %v234 = vlaneseq
    %v235 = vshrl.u32 %v234, 7
    %v236 = vsub.s32 0, %v235
    %v237 = vrot.slane %v232, %v236
    %v239 = vadd.f32 %v229, %v237
    %v240 = vmax.f32 %v239, 0.0
    %v241 = vld [vmem:[#allocation5] sm:$0xff]
    %v242 = vld [vmem:[#allocation5 + $0x8] sm:$0xff]
    %v243 = vld [vmem:[#allocation5 + $0x10] sm:$0xff]
    %v244 = vld [vmem:[#allocation5 + $0x18] sm:$0xff]
    %v245 = vld [vmem:[#allocation5 + $0x20] sm:$0xff]
    %v246 = vld [vmem:[#allocation5 + $0x28] sm:$0xff]
    %v247 = vld [vmem:[#allocation5 + $0x30] sm:$0xff]
    %v248 = vld [vmem:[#allocation5 + $0x38] sm:$0xff]
    %v249 = vld [vmem:[#allocation5 + $0x40] sm:$0xff]
    %v250 = vld [vmem:[#allocation5 + $0x48] sm:$0xff]
    %v251 = vld [vmem:[#allocation5 + $0x50] sm:$0xff]
    %v252 = vld [vmem:[#allocation5 + $0x58] sm:$0xff]
    %v253 = vld [vmem:[#allocation5 + $0x60] sm:$0xff]
    %v254 = vld [vmem:[#allocation5 + $0x68] sm:$0xff]
    %v255 = vld [vmem:[#allocation5 + $0x70] sm:$0xff]
    %v256 = vld [vmem:[#allocation5 + $0x78] sm:$0xff]
    %v257 = vld [vmem:[%s6] sm:$0x1]
    %v259 = vlaneseq
    %v260 = vshrl.u32 %v259, 7
    %v261 = vsub.s32 0, %v260
    %v262 = vrot.slane %v257, %v261
    %264 = vmatprep.subr.mxu0 0.0
    %265 = vmatpush1.msra.mxu0 %v241
    %266 = vmatprep.subr.mxu0 0.0
    %267 = vmatpush1.msra.mxu0 %v242
    %268 = vmatprep.subr.mxu0 0.0
    %269 = vmatpush1.msra.mxu0 %v243
    %270 = vmatprep.subr.mxu0 0.0
    %271 = vmatpush1.msra.mxu0 %v244
    %272 = vmatprep.subr.mxu0 0.0
    %273 = vmatpush1.msra.mxu0 %v245
    %274 = vmatprep.subr.mxu0 0.0
    %275 = vmatpush1.msra.mxu0 %v246
    %276 = vmatprep.subr.mxu0 0.0
    %277 = vmatpush1.msra.mxu0 %v247
    %278 = vmatprep.subr.mxu0 0.0
    %279 = vmatpush1.msra.mxu0 %v248
    %280 = vmatprep.subr.mxu0 0.0
    %281 = vmatpush1.msra.mxu0 %v249
    %282 = vmatprep.subr.mxu0 0.0
    %283 = vmatpush1.msra.mxu0 %v250
    %284 = vmatprep.subr.mxu0 0.0
    %285 = vmatpush1.msra.mxu0 %v251
    %286 = vmatprep.subr.mxu0 0.0
    %287 = vmatpush1.msra.mxu0 %v252
    %288 = vmatprep.subr.mxu0 0.0
    %289 = vmatpush1.msra.mxu0 %v253
    %290 = vmatprep.subr.mxu0 0.0
    %291 = vmatpush1.msra.mxu0 %v254
    %292 = vmatprep.subr.mxu0 0.0
    %293 = vmatpush1.msra.mxu0 %v255
    %294 = vmatprep.subr.mxu0 0.0
    %295 = vmatpush1.msra.mxu0 %v256
    %296 = vmatprep.subr.mxu0 0.0
    %297 = vmatpush1.msra.mxu0 0.0
    %298 = vmatprep.subr.mxu0 0.0
    %299 = vmatpush1.msra.mxu0 0.0
    %300 = vmatprep.subr.mxu0 0.0
    %301 = vmatpush1.msra.mxu0 0.0
    %302 = vmatprep.subr.mxu0 0.0
    %303 = vmatpush1.msra.mxu0 0.0
    %304 = vmatprep.subr.mxu0 0.0
    %305 = vmatpush1.msra.mxu0 0.0
    %306 = vmatprep.subr.mxu0 0.0
    %307 = vmatpush1.msra.mxu0 0.0
    %308 = vmatprep.subr.mxu0 0.0
    %309 = vmatpush1.msra.mxu0 0.0
    %310 = vmatprep.subr.mxu0 0.0
    %311 = vmatpush1.msra.mxu0 0.0
    %312 = vmatprep.subr.mxu0 0.0
    %313 = vmatpush1.msra.mxu0 0.0
    %314 = vmatprep.subr.mxu0 0.0
    %315 = vmatpush1.msra.mxu0 0.0
    %316 = vmatprep.subr.mxu0 0.0
    %317 = vmatpush1.msra.mxu0 0.0
    %318 = vmatprep.subr.mxu0 0.0
    %319 = vmatpush1.msra.mxu0 0.0
    %320 = vmatprep.subr.mxu0 0.0
    %321 = vmatpush1.msra.mxu0 0.0
    %322 = vmatprep.subr.mxu0 0.0
    %323 = vmatpush1.msra.mxu0 0.0
    %324 = vmatprep.subr.mxu0 0.0
    %325 = vmatpush1.msra.mxu0 0.0
    %326 = vmatprep.subr.mxu0 0.0
    %327 = vmatpush1.msra.mxu0 0.0
    %328 = vmatprep.mubr.f32.mxu0 0.0
    %329 = vmatmul.mubr.f32.gmra.mrb[0].mxu0 %v240
    %v330 = vpop.f32.mrb[0].mxu0
    %v331 = vadd.f32 %v262, %v330
    %v332 = vpop.f32.mrb[0].mxu0
    %333 = vdwg.mxu0
    %v334 = vmax.f32 %v331, 0.0
    %v335 = vld [vmem:[#allocation7] sm:$0xff]
    %v336 = vld [vmem:[#allocation7 + $0x8] sm:$0xff]
    %v337 = vld [vmem:[#allocation7 + $0x10] sm:$0xff]
    %v338 = vld [vmem:[#allocation7 + $0x18] sm:$0xff]
    %v339 = vld [vmem:[#allocation7 + $0x20] sm:$0xff]
    %v340 = vld [vmem:[#allocation7 + $0x28] sm:$0xff]
    %v341 = vld [vmem:[#allocation7 + $0x30] sm:$0xff]
    %v342 = vld [vmem:[#allocation7 + $0x38] sm:$0xff]
    %v343 = vld [vmem:[#allocation7 + $0x40] sm:$0xff]
    %v344 = vld [vmem:[#allocation7 + $0x48] sm:$0xff]
    %v345 = vld [vmem:[#allocation7 + $0x50] sm:$0xff]
    %v346 = vld [vmem:[#allocation7 + $0x58] sm:$0xff]
    %v347 = vld [vmem:[#allocation7 + $0x60] sm:$0xff]
    %v348 = vld [vmem:[#allocation7 + $0x68] sm:$0xff]
    %v349 = vld [vmem:[#allocation7 + $0x70] sm:$0xff]
    %v350 = vld [vmem:[#allocation7 + $0x78] sm:$0xff]
    %v351 = vld [vmem:[%s8] sm:$0x1]
    %v353 = vlaneseq
    %v354 = vshrl.u32 %v353, 7
    %v355 = vsub.s32 0, %v354
    %v356 = vrot.slane %v351, %v355
    %358 = vmatprep.subr.mxu0 0.0
    %359 = vmatpush1.msra.mxu0 %v335
    %360 = vmatprep.subr.mxu0 0.0
    %361 = vmatpush1.msra.mxu0 %v336
    %362 = vmatprep.subr.mxu0 0.0
    %363 = vmatpush1.msra.mxu0 %v337
    %364 = vmatprep.subr.mxu0 0.0
    %365 = vmatpush1.msra.mxu0 %v338
    %366 = vmatprep.subr.mxu0 0.0
    %367 = vmatpush1.msra.mxu0 %v339
    %368 = vmatprep.subr.mxu0 0.0
    %369 = vmatpush1.msra.mxu0 %v340
    %370 = vmatprep.subr.mxu0 0.0
    %371 = vmatpush1.msra.mxu0 %v341
    %372 = vmatprep.subr.mxu0 0.0
    %373 = vmatpush1.msra.mxu0 %v342
    %374 = vmatprep.subr.mxu0 0.0
    %375 = vmatpush1.msra.mxu0 %v343
    %376 = vmatprep.subr.mxu0 0.0
    %377 = vmatpush1.msra.mxu0 %v344
    %378 = vmatprep.subr.mxu0 0.0
    %379 = vmatpush1.msra.mxu0 %v345
    %380 = vmatprep.subr.mxu0 0.0
    %381 = vmatpush1.msra.mxu0 %v346
    %382 = vmatprep.subr.mxu0 0.0
    %383 = vmatpush1.msra.mxu0 %v347
    %384 = vmatprep.subr.mxu0 0.0
    %385 = vmatpush1.msra.mxu0 %v348
    %386 = vmatprep.subr.mxu0 0.0
    %387 = vmatpush1.msra.mxu0 %v349
    %388 = vmatprep.subr.mxu0 0.0
    %389 = vmatpush1.msra.mxu0 %v350
    %390 = vmatprep.subr.mxu0 0.0
    %391 = vmatpush1.msra.mxu0 0.0
    %392 = vmatprep.subr.mxu0 0.0
    %393 = vmatpush1.msra.mxu0 0.0
    %394 = vmatprep.subr.mxu0 0.0
    %395 = vmatpush1.msra.mxu0 0.0
    %396 = vmatprep.subr.mxu0 0.0
    %397 = vmatpush1.msra.mxu0 0.0
    %398 = vmatprep.subr.mxu0 0.0
    %399 = vmatpush1.msra.mxu0 0.0
    %400 = vmatprep.subr.mxu0 0.0
    %401 = vmatpush1.msra.mxu0 0.0
    %402 = vmatprep.subr.mxu0 0.0
    %403 = vmatpush1.msra.mxu0 0.0
    %404 = vmatprep.subr.mxu0 0.0
    %405 = vmatpush1.msra.mxu0 0.0
    %406 = vmatprep.subr.mxu0 0.0
    %407 = vmatpush1.msra.mxu0 0.0
    %408 = vmatprep.subr.mxu0 0.0
    %409 = vmatpush1.msra.mxu0 0.0
    %410 = vmatprep.subr.mxu0 0.0
    %411 = vmatpush1.msra.mxu0 0.0
    %412 = vmatprep.subr.mxu0 0.0
    %413 = vmatpush1.msra.mxu0 0.0
    %414 = vmatprep.subr.mxu0 0.0
    %415 = vmatpush1.msra.mxu0 0.0
    %416 = vmatprep.subr.mxu0 0.0
    %417 = vmatpush1.msra.mxu0 0.0
    %418 = vmatprep.subr.mxu0 0.0
    %419 = vmatpush1.msra.mxu0 0.0
    %420 = vmatprep.subr.mxu0 0.0
    %421 = vmatpush1.msra.mxu0 0.0
    %422 = vmatprep.mubr.f32.mxu0 0.0
    %423 = vmatmul.mubr.f32.gmra.mrb[0].mxu0 %v334
    %v424 = vpop.f32.mrb[0].mxu0
    %v425 = vadd.f32 %v356, %v424
    %v426 = vpop.f32.mrb[0].mxu0
    %427 = vdwg.mxu0
    %428 = vst [vmem:[#allocation8] sm:$0xff] %v425
    // Predicated region
    $region50: #{tpu_custom_call.1} parent=1 // pred_check
      _
    $region51: #{tpu_custom_call.1} parent=1 // pred_check_branch
      %430 = sbr.rel (0) target = $region53
    $region52: #{tpu_custom_call.1} parent=1 // pred_region
      %s432 = ssub.s32 128, 128
      %433 = vsyncadd [#allocation4], %s432
      %s435 = sshll.u32 [#allocation8], 4
      %s436 = int_to_ptr.vmem [resolvable:$true] %s435
      %438 = dma.vmem_to_hbm [thread:$0]  %s436, 128, %s9, [#allocation4]
    $region53: #{tpu_custom_call.1} parent=1 // pred_fallthru
      _
    // Predicated region
    $region54: #{tpu_custom_call.1} parent=1 // pred_check
      _
    $region55: #{tpu_custom_call.1} parent=1 // pred_check_branch
      %440 = sbr.rel (0) target = $region57
    $region56: #{tpu_custom_call.1} parent=1 // pred_region
      %441 = dma.done [#allocation4], 128
    $region57: #{tpu_custom_call.1} parent=1 // pred_fallthru
      _
    %442 = vsyncpa [#allocation3], 1
    %443 = vsyncpa [#allocation6], 1
    %444 = vsyncpa [#allocation4], 1

</llo_original>
